<compile_context>
chip_gen: v7x
topology: tpu7x:2x2x1
jax: 0.10.0
libtpu: 0.0.40
codegen_flags: <defaults>
</compile_context>

<pallas_src>
import functools
import math

import jax
import jax.numpy as jnp
from jax import lax
from jax.experimental import pallas as pl
from jax.experimental.pallas import tpu as pltpu


def _label_smoothing_kl_kernel(tgt_ref, logits_ref, out_ref, *,
                               sv, log_sv, conf, log_conf,
                               ignore_col, vocab, n_rows, tile_n,
                               slab_start, slab_width):
    """Per-tile: closed-form smoothed-KL row sums, masked & reduced to 1 scalar."""
    i = pl.program_id(0)

    logits = logits_ref[...].astype(jnp.float32)           # (tile_n, V)
    tgt = tgt_ref[...]                                      # (tile_n, 1) int32

    # ---- pass 1 over raw logits: row max, row sum, target-column select ----
    m = jnp.max(logits, axis=-1, keepdims=True)                           # (tile_n,1)
    sum_logits = jnp.sum(logits, axis=-1, keepdims=True)                  # (tile_n,1)
    col = lax.broadcasted_iota(jnp.int32, logits.shape, 1)
    tgt_logit = jnp.sum(jnp.where(col == tgt, logits, 0.0),
                        axis=-1, keepdims=True)                           # (tile_n,1)

    # Ignore column is a compile-time constant: only touch its 128-lane slab.
    slab = logits[:, slab_start:slab_start + slab_width]
    col_s = slab_start + lax.broadcasted_iota(jnp.int32, slab.shape, 1)
    ign_logit = jnp.sum(jnp.where(col_s == ignore_col, slab, 0.0),
                        axis=-1, keepdims=True)                           # (tile_n,1)

    # ---- pass 2: the only remaining full-width sweep (exp for logsumexp) ----
    sum_exp = jnp.sum(jnp.exp(logits - m), axis=-1, keepdims=True)
    lse = m + jnp.log(sum_exp)                                            # logsumexp

    # Fold max / lse into per-row scalars (no materialized `shifted` tensor).
    sum_logp = sum_logits - vocab * lse          # Sigma_v logp
    logp_tgt = tgt_logit - lse                   # logp at target column
    logp_ign = ign_logit - lse                   # logp at ignore column

    # Closed-form row sum of kl = prob * (log(prob) - logp) with
    #   prob = sv everywhere, 0 at ignore column, conf scattered at target
    #   (torch scatter order: if target == ignore column, conf wins).
    is_same = tgt == ignore_col
    n_smooth = jnp.where(is_same, float(vocab - 1), float(vocab - 2))
    sum_logp_smooth = sum_logp - logp_tgt - jnp.where(is_same, 0.0, logp_ign)

    kl_row = sv * (n_smooth * log_sv - sum_logp_smooth)
    if conf > 0.0:   # label_smoothing == 1.0 -> confidence prob is 0 -> no term
        kl_row = kl_row + conf * (log_conf - logp_tgt)

    # Mask rows past N (partial last tile reads unspecified padding data).
    row = i * tile_n + lax.broadcasted_iota(jnp.int32, (tile_n, 1), 0)
    kl_row = jnp.where(row < n_rows, kl_row, 0.0)

    # One partial sum per grid step, broadcast into a lane-dense output block.
    out_ref[...] = jnp.broadcast_to(jnp.sum(kl_row), out_ref.shape)


def _round_up(x, m):
    return (x + m - 1) // m * m


def _physical_vmem_bytes():
    try:
        return int(pltpu.get_tpu_info().vmem_capacity_bytes)
    except Exception:
        return 64 << 20          # conservative (v7x per-TensorCore size)


def _choose_tile_n(n_rows, vocab, itemsize, *, vmem_budget,
                   target_block_bytes=16 << 20):
    """Row tile sized for ~target_block_bytes of input, VMEM-budgeted.

    Budget per row: 2x input (double-buffered DMA) + ~2x f32 in-kernel temps.
    Capped so the grid keeps >= ~4 steps (pipeline + v7x megacore sharding).
    """
    per_row_bytes = vocab * (2 * itemsize + 8)
    tile = vmem_budget // max(1, per_row_bytes)
    tile = min(tile, target_block_bytes // max(1, vocab * itemsize))
    tile = min(tile, _round_up(-(-n_rows // 4), 8))
    tile = max(8, (tile // 8) * 8)
    return int(tile)


def label_smoothing_loss(output, target, *, label_smoothing, tgt_vocab_size,
                         ignore_index=-100, reduction="none", tile_n=None):
    assert 0.0 < label_smoothing <= 1.0
    assert reduction in ("sum", "mean", "batchmean", "none")
    B, T, V = output.shape
    assert V == tgt_vocab_size
    assert tgt_vocab_size > 2, "smoothing_value diverges for vocab <= 2"

    sv = float(label_smoothing) / (tgt_vocab_size - 2)
    conf = 1.0 - float(label_smoothing)
    log_sv = math.log(sv)
    log_conf = math.log(conf) if conf > 0.0 else 0.0
    # torch buffer indexing one_hot[ignore_index] wraps negative indices:
    ignore_col = ignore_index % tgt_vocab_size
    slab_start = (ignore_col // 128) * 128
    slab_width = min(128, V - slab_start)

    N = B * T
    logits = output.reshape(N, V)                 # keep input dtype (bf16 stays bf16)
    tgt = target.reshape(N, 1).astype(jnp.int32)  # tiny; (N,) ints only

    phys_vmem = _physical_vmem_bytes()
    vmem_budget = (phys_vmem * 3) // 4            # headroom for out/targets/scratch
    if tile_n is None:
        tile_n = _choose_tile_n(N, V, logits.dtype.itemsize,
                                vmem_budget=vmem_budget)
    num_tiles = pl.cdiv(N, tile_n)

    # Scoped-VMEM request: actual need + margin, never the full physical VMEM.
    needed = tile_n * V * (2 * logits.dtype.itemsize + 8) + (4 << 20)
    vmem_limit = int(min(phys_vmem - (8 << 20), max(needed, 32 << 20)))

    kernel = functools.partial(
        _label_smoothing_kl_kernel,
        sv=sv, log_sv=log_sv, conf=conf, log_conf=log_conf,
        ignore_col=ignore_col, vocab=V, n_rows=N, tile_n=tile_n,
        slab_start=slab_start, slab_width=slab_width)

    partials = pl.pallas_call(
        kernel,
        out_shape=jax.ShapeDtypeStruct((num_tiles, 8, 128), jnp.float32),
        grid=(num_tiles,),
        in_specs=[
            pl.BlockSpec((tile_n, 1), lambda i: (i, 0)),    # targets
            pl.BlockSpec((tile_n, V), lambda i: (i, 0)),    # logits
        ],
        out_specs=pl.BlockSpec((1, 8, 128), lambda i: (i, 0, 0)),
        compiler_params=pltpu.CompilerParams(
            dimension_semantics=("parallel",),
            vmem_limit_bytes=vmem_limit),
    )(tgt, logits)

    total = partials[:, 0, 0].sum()               # num_tiles scalars -> total KL

    if reduction == "none":
        # F.kl_div(...,'none').sum(2).sum(0).mean()  ==  total / T
        return total / T
    if reduction == "sum":
        return total
    if reduction == "mean":
        return total / (B * T * V)
    return total / B                               # batchmean


def _reference(output, target, *, label_smoothing, tgt_vocab_size, ignore_index):
    """Pure-JAX elementwise reference of the same (intended) semantics, 'none' path."""
    B, T, V = output.shape
    smoothing_value = label_smoothing / (tgt_vocab_size - 2)
    confidence = 1.0 - label_smoothing
    ignore_col = ignore_index % tgt_vocab_size
    logp = jax.nn.log_softmax(output.astype(jnp.float32), axis=-1)
    col = jnp.arange(V)[None, None, :]
    prob = jnp.full((B, T, V), smoothing_value, jnp.float32)
    prob = jnp.where(col == ignore_col, 0.0, prob)
    prob = jnp.where(col == target[..., None], confidence, prob)
    kl = jnp.where(prob > 0.0, prob * (jnp.log(prob) - logp), 0.0)
    return kl.sum(2).sum(0).mean()


if __name__ == "__main__":
    # N = B*T = 18 is deliberately NOT a multiple of the row tile (8) so the
    # ragged-last-tile masking path is exercised on hardware.
    B, T, V = 2, 9, 128
    label_smoothing = 0.1
    ignore_index = -100          # wraps to column 28 of the smoothing buffer
    key = jax.random.PRNGKey(0)
    k_out, k_tgt = jax.random.split(key)
    output = jax.random.normal(k_out, (B, T, V), dtype=jnp.float32)
    target = jax.random.randint(k_tgt, (B, T), 0, V, dtype=jnp.int32)
    # Force one row whose target hits the wrapped ignore column (scatter-order case).
    target = target.at[0, 0].set(ignore_index % V)

    loss = label_smoothing_loss(
        output, target,
        label_smoothing=label_smoothing,
        tgt_vocab_size=V,
        ignore_index=ignore_index,
        reduction="none",
    )
    loss = jax.block_until_ready(loss)

    ref = _reference(output, target,
                     label_smoothing=label_smoothing,
                     tgt_vocab_size=V,
                     ignore_index=ignore_index)
    assert jnp.allclose(loss, ref, atol=1e-3, rtol=1e-4), (loss, ref)

    print("KERNEL_OK")
</pallas_src>

<mosaic_0001>
module attributes {stable_mosaic.version = 11 : i64} {
  func.func @_label_smoothing_kl_kernel(%arg0: i32, %arg1: memref<8x1xi32, #tpu.memory_space<vmem>>, %arg2: memref<8x128xf32, #tpu.memory_space<vmem>>, %arg3: memref<1x8x128xf32, #tpu.memory_space<vmem>>) attributes {dimension_semantics = [#tpu.dimension_semantics<parallel>], iteration_bounds = array<i64: 3>, scalar_prefetch = 0 : i64, scratch_operands = 0 : i64, tpu.core_type = #tpu.core_type<tc>, window_params = [{transform_indices = @transform_0, window_bounds = array<i64: 8, 1>}, {transform_indices = @transform_1, window_bounds = array<i64: 8, 128>}, {transform_indices = @transform_2, window_bounds = array<i64: 1, 8, 128>}]} {
    %c0 = arith.constant 0 : index
    %c0_0 = arith.constant 0 : index
    %0 = vector.load %arg2[%c0, %c0_0] : memref<8x128xf32, #tpu.memory_space<vmem>>, vector<8x128xf32>
    %c0_1 = arith.constant 0 : index
    %c0_2 = arith.constant 0 : index
    %1 = vector.load %arg1[%c0_1, %c0_2] : memref<8x1xi32, #tpu.memory_space<vmem>>, vector<8x1xi32>
    %cst = arith.constant dense<0xFF800000> : vector<8xf32>
    %2 = vector.multi_reduction <maximumf>, %0, %cst [1] : vector<8x128xf32> to vector<8xf32>
    %3 = vector.shape_cast %2 : vector<8xf32> to vector<8x1xf32>
    %cst_3 = arith.constant dense<0.000000e+00> : vector<8xf32>
    %4 = vector.multi_reduction <add>, %0, %cst_3 [1] : vector<8x128xf32> to vector<8xf32>
    %5 = vector.shape_cast %4 : vector<8xf32> to vector<8x1xf32>
    %6 = tpu.iota {dimensions = array<i32: 1>} : vector<8x128xi32>
    %7 = vector.broadcast %1 : vector<8x1xi32> to vector<8x128xi32>
    %8 = arith.cmpi eq, %6, %7 : vector<8x128xi32>
    %cst_4 = arith.constant 0.000000e+00 : f32
    %9 = vector.broadcast %cst_4 : f32 to vector<8x128xf32>
    %10 = arith.select %8, %0, %9 : vector<8x128xi1>, vector<8x128xf32>
    %cst_5 = arith.constant dense<0.000000e+00> : vector<8xf32>
    %11 = vector.multi_reduction <add>, %10, %cst_5 [1] : vector<8x128xf32> to vector<8xf32>
    %12 = vector.shape_cast %11 : vector<8xf32> to vector<8x1xf32>
    %13 = tpu.iota {dimensions = array<i32: 1>} : vector<8x128xi32>
    %c0_i32 = arith.constant 0 : i32
    %14 = vector.broadcast %c0_i32 : i32 to vector<8x128xi32>
    %15 = arith.addi %14, %13 : vector<8x128xi32>
    %c28_i32 = arith.constant 28 : i32
    %16 = vector.broadcast %c28_i32 : i32 to vector<8x128xi32>
    %17 = arith.cmpi eq, %15, %16 : vector<8x128xi32>
    %cst_6 = arith.constant 0.000000e+00 : f32
    %18 = vector.broadcast %cst_6 : f32 to vector<8x128xf32>
    %19 = arith.select %17, %0, %18 : vector<8x128xi1>, vector<8x128xf32>
    %cst_7 = arith.constant dense<0.000000e+00> : vector<8xf32>
    %20 = vector.multi_reduction <add>, %19, %cst_7 [1] : vector<8x128xf32> to vector<8xf32>
    %21 = vector.shape_cast %20 : vector<8xf32> to vector<8x1xf32>
    %22 = vector.broadcast %3 : vector<8x1xf32> to vector<8x128xf32>
    %23 = arith.subf %0, %22 : vector<8x128xf32>
    %24 = math.exp %23 : vector<8x128xf32>
    %cst_8 = arith.constant dense<0.000000e+00> : vector<8xf32>
    %25 = vector.multi_reduction <add>, %24, %cst_8 [1] : vector<8x128xf32> to vector<8xf32>
    %26 = vector.shape_cast %25 : vector<8xf32> to vector<8x1xf32>
    %27 = math.log %26 : vector<8x1xf32>
    %28 = arith.addf %3, %27 : vector<8x1xf32>
    %cst_9 = arith.constant 1.280000e+02 : f32
    %29 = vector.broadcast %cst_9 : f32 to vector<8x1xf32>
    %30 = arith.mulf %29, %28 : vector<8x1xf32>
    %31 = arith.subf %5, %30 : vector<8x1xf32>
    %32 = arith.subf %12, %28 : vector<8x1xf32>
    %33 = arith.subf %21, %28 : vector<8x1xf32>
    %c28_i32_10 = arith.constant 28 : i32
    %34 = vector.broadcast %c28_i32_10 : i32 to vector<8x1xi32>
    %35 = arith.cmpi eq, %1, %34 : vector<8x1xi32>
    %cst_11 = arith.constant 1.270000e+02 : f32
    %cst_12 = arith.constant 1.260000e+02 : f32
    %36 = vector.broadcast %cst_11 : f32 to vector<8x1xf32>
    %37 = vector.broadcast %cst_12 : f32 to vector<8x1xf32>
    %38 = arith.select %35, %36, %37 : vector<8x1xi1>, vector<8x1xf32>
    %39 = arith.subf %31, %32 : vector<8x1xf32>
    %cst_13 = arith.constant 0.000000e+00 : f32
    %40 = vector.broadcast %cst_13 : f32 to vector<8x1xf32>
    %41 = arith.select %35, %40, %33 : vector<8x1xi1>, vector<8x1xf32>
    %42 = arith.subf %39, %41 : vector<8x1xf32>
    %cst_14 = arith.constant -7.1388669 : f32
    %43 = vector.broadcast %cst_14 : f32 to vector<8x1xf32>
    %44 = arith.mulf %38, %43 : vector<8x1xf32>
    %45 = arith.subf %44, %42 : vector<8x1xf32>
    %cst_15 = arith.constant 7.93650805E-4 : f32
    %46 = vector.broadcast %cst_15 : f32 to vector<8x1xf32>
    %47 = arith.mulf %46, %45 : vector<8x1xf32>
    %cst_16 = arith.constant -0.105360515 : f32
    %48 = vector.broadcast %cst_16 : f32 to vector<8x1xf32>
    %49 = arith.subf %48, %32 : vector<8x1xf32>
    %cst_17 = arith.constant 0.899999976 : f32
    %50 = vector.broadcast %cst_17 : f32 to vector<8x1xf32>
    %51 = arith.mulf %50, %49 : vector<8x1xf32>
    %52 = arith.addf %47, %51 : vector<8x1xf32>
    %c8_i32 = arith.constant 8 : i32
    %53 = arith.muli %arg0, %c8_i32 : i32
    %54 = tpu.iota {dimensions = array<i32: 0>} : vector<8x1xi32>
    %55 = vector.broadcast %53 : i32 to vector<8x1xi32>
    %56 = arith.addi %55, %54 : vector<8x1xi32>
    %c18_i32 = arith.constant 18 : i32
    %57 = vector.broadcast %c18_i32 : i32 to vector<8x1xi32>
    %58 = arith.cmpi slt, %56, %57 : vector<8x1xi32>
    %cst_18 = arith.constant 0.000000e+00 : f32
    %59 = vector.broadcast %cst_18 : f32 to vector<8x1xf32>
    %60 = arith.select %58, %52, %59 : vector<8x1xi1>, vector<8x1xf32>
    %61 = vector.shape_cast %60 : vector<8x1xf32> to vector<1x8x1xf32>
    %cst_19 = arith.constant dense<0.000000e+00> : vector<1xf32>
    %62 = vector.multi_reduction <add>, %61, %cst_19 [1, 2] : vector<1x8x1xf32> to vector<1xf32>
    %63 = vector.shape_cast %62 : vector<1xf32> to vector<1x1x1xf32>
    %64 = vector.extract %63[0, 0, 0] : f32 from vector<1x1x1xf32>
    %65 = vector.broadcast %64 : f32 to vector<1x8x128xf32>
    %c0_20 = arith.constant 0 : index
    %c0_21 = arith.constant 0 : index
    %c0_22 = arith.constant 0 : index
    %66 = vector.load %arg3[%c0_20, %c0_21, %c0_22] : memref<1x8x128xf32, #tpu.memory_space<vmem>>, vector<1x8x128xf32>
    tpu.vector_store %arg3[%c0_20, %c0_21, %c0_22], %65 {strides = array<i32>} : memref<1x8x128xf32, #tpu.memory_space<vmem>>, vector<1x8x128xf32>,
    return
  }
  func.func @transform_0(%arg0: i32) -> (i32, i32) {
    %c0_i32 = arith.constant 0 : i32
    %c0_i32_0 = arith.constant 0 : i32
    return %arg0, %c0_i32 : i32, i32
  }
  func.func @transform_1(%arg0: i32) -> (i32, i32) {
    %c0_i32 = arith.constant 0 : i32
    %c0_i32_0 = arith.constant 0 : i32
    return %arg0, %c0_i32 : i32, i32
  }
  func.func @transform_2(%arg0: i32) -> (i32, i32, i32) {
    %c0_i32 = arith.constant 0 : i32
    %c0_i32_0 = arith.constant 0 : i32
    %c0_i32_1 = arith.constant 0 : i32
    return %arg0, %c0_i32, %c0_i32_0 : i32, i32, i32
  }
}

</mosaic_0001>

<llo_original>
// kernel: tpu_custom_call.1
$region0: #{tpu_custom_call.1}
  #allocation0 [shape = 'u32[]', space=smem, size = 0x4, offset = 0x4, fixed_abs, tag = 'smem constant byte address 0x4 - core index']
  #allocation1 [shape = 'u32[144,128]{1,0:T(1,128)}', space=vmem, size = 0x12000, scoped, tag = 'internal scratch']
  %s0 = inlined_call_operand.vmem [shape: s32[18,1], index: 0, kind: input, shape index: {}]
  %s1 = inlined_call_operand.vmem [shape: f32[18,128], index: 1, kind: input, shape index: {}]
  %s2 = inlined_call_operand.hbm [shape: f32[3,8,128], index: 2, kind: output, shape index: {}]
  %s3 = sld [smem:[#allocation0]]
  $region41: #{tpu_custom_call.1} parent=0
    _
  %s5 = ssub.s32 1, %s3
  %s6 = scalar_select 0, %s5, %s3
  $region1: #{tpu_custom_call.1} parent=0
    #allocation2 [shape = 'u8[8192]{0}', space=vmem, size = 0x2000, scoped, tag = 'output window, operand 0']
    #allocation3 [shape = 's32[2]{0}', space=sflag, size = 0x8, scoped, tag = 'scoped memory for tpu_custom_call.1']
    %7 = vsyncpa [#allocation3], 0
    %s8 = scalar_lea.sflag [#allocation3], 1
    %9 = vsyncpa %s8, 0
    loop: start=0, step=1, limit=5
    $region2: #{tpu_custom_call.1} parent=1 // loop_pre_header
      _
    $region3: #{tpu_custom_call.1} parent=1 // loop_header
      %s11 = sphi 0, %s15
      %p12 = scmp.ge.s32.totalorder %s11, 5
      %s21 = sphi 0, %s23
      %s24 = sphi 0, %s21
      %s25 = sphi 0, %s24
      %s41 = sphi 0, %s25
      %s47 = sphi 0, %s49
      %s50 = sphi 0, %s47
      %s51 = sphi 0, %s50
      %s67 = sphi 0, %s51
      %s73 = sphi 0, %s75
      %s76 = sphi 0, %s73
      %s77 = sphi 0, %s76
      %s93 = sphi 0, %s77
    $region4: #{tpu_custom_call.1} parent=1 // loop_header_branch
      %14 = sbr.rel (%p12) target = $region8
    $region5: #{tpu_custom_call.1} parent=1 // loop_body
      %s16 = ssub.s32 %s11, 1
      %s17 = ssub.s32 %s11, 2
      %s18 = sadd.s32 %s11, 1
      %s19 = ssub.s32 %s11, %s18
      %p20 = scmp.eq.s32.totalorder %s19, 0
      %s22 = sadd.s32 %s21, 1
      %s23 = scalar_select %p20, %s21, %s22
      %p26 = pneg %p20
      %p27 = scmp.eq.s32.totalorder %s11, 2
      %p28 = por %p26, %p27
      %p29 = scmp.ne.s32.totalorder %s21, %s24
      %p30 = scmp.eq.s32.totalorder %s11, 0
      %p31 = por %p29, %p30
      %p32 = scmp.ne.s32.totalorder %s21, %s24
      %p33 = scmp.eq.s32.totalorder %s16, 2
      %p34 = por %p32, %p33
      %p35 = scmp.ne.s32.totalorder %s24, %s25
      %p36 = scmp.eq.s32.totalorder %s16, 0
      %p37 = por %p35, %p36
      %p38 = scmp.ne.s32.totalorder %s24, %s25
      %p39 = scmp.eq.s32.totalorder %s17, 2
      %p40 = por %p38, %p39
      %p42 = scmp.ne.s32.totalorder %s25, %s41
      %p43 = scmp.eq.s32.totalorder %s17, 0
      %p44 = por %p42, %p43
      %s45 = ssub.s32 %s11, %s18
      %p46 = scmp.eq.s32.totalorder %s45, 0
      %s48 = sadd.s32 %s47, 1
      %s49 = scalar_select %p46, %s47, %s48
      %p52 = pneg %p46
      %p53 = scmp.eq.s32.totalorder %s11, 2
      %p54 = por %p52, %p53
      %p55 = scmp.ne.s32.totalorder %s47, %s50
      %p56 = scmp.eq.s32.totalorder %s11, 0
      %p57 = por %p55, %p56
      %p58 = scmp.ne.s32.totalorder %s47, %s50
      %p59 = scmp.eq.s32.totalorder %s16, 2
      %p60 = por %p58, %p59
      %p61 = scmp.ne.s32.totalorder %s50, %s51
      %p62 = scmp.eq.s32.totalorder %s16, 0
      %p63 = por %p61, %p62
      %p64 = scmp.ne.s32.totalorder %s50, %s51
      %p65 = scmp.eq.s32.totalorder %s17, 2
      %p66 = por %p64, %p65
      %p68 = scmp.ne.s32.totalorder %s51, %s67
      %p69 = scmp.eq.s32.totalorder %s17, 0
      %p70 = por %p68, %p69
      %s71 = ssub.s32 %s11, %s18
      %p72 = scmp.eq.s32.totalorder %s71, 0
      %s74 = sadd.s32 %s73, 1
      %s75 = scalar_select %p72, %s73, %s74
      %p78 = pneg %p72
      %p79 = scmp.eq.s32.totalorder %s11, 2
      %p80 = por %p78, %p79
      %p81 = scmp.ne.s32.totalorder %s73, %s76
      %p82 = scmp.eq.s32.totalorder %s11, 0
      %p83 = por %p81, %p82
      %p84 = scmp.ne.s32.totalorder %s73, %s76
      %p85 = scmp.eq.s32.totalorder %s16, 2
      %p86 = por %p84, %p85
      %p87 = scmp.ne.s32.totalorder %s76, %s77
      %p88 = scmp.eq.s32.totalorder %s16, 0
      %p89 = por %p87, %p88
      %p90 = scmp.ne.s32.totalorder %s76, %s77
      %p91 = scmp.eq.s32.totalorder %s17, 2
      %p92 = por %p90, %p91
      %p94 = scmp.ne.s32.totalorder %s77, %s93
      %p95 = scmp.eq.s32.totalorder %s17, 0
      %p96 = por %p94, %p95
      %p97 = scmp.le.s32.totalorder 1, %s11
      %p98 = scmp.lt.s32.totalorder %s11, 4
      %p99 = pnand %p97, %p98
      %p100 = pneg %p99
      // Predicated region
      $region9: #{tpu_custom_call.1} parent=5 // pred_check
        _
      $region10: #{tpu_custom_call.1} parent=5 // pred_check_branch
        %102 = sbr.rel (%p99) target = $region12
      $region11: #{tpu_custom_call.1} parent=5 // pred_region
        %s103 = ssub.s32 %s11, 1
      $region12: #{tpu_custom_call.1} parent=5 // pred_fallthru
        _
      %p104 = scmp.lt.s32.totalorder %s11, 3
      // Predicated region
      $region13: #{tpu_custom_call.1} parent=5 // pred_check
        %p105 = pneg %p104
      $region14: #{tpu_custom_call.1} parent=5 // pred_check_branch
        %107 = sbr.rel (%p105) target = $region16
      $region15: #{tpu_custom_call.1} parent=5 // pred_region
        // Predicated region
        $region17: #{tpu_custom_call.1} parent=15 // pred_check
          %p108 = pneg %p31
        $region18: #{tpu_custom_call.1} parent=15 // pred_check_branch
          %110 = sbr.rel (%p108) target = $region20
        $region19: #{tpu_custom_call.1} parent=15 // pred_region
          %p111 = scmp.lt.s32.totalorder %s11, 2
          %s112 = scalar_select %p111, %s11, 2
          %s113 = smul.addr %s112, 8
          %s114 = scalar_lea.vmem %s0, %s113
        $region20: #{tpu_custom_call.1} parent=15 // pred_fallthru
          _
        // Predicated region
        $region21: #{tpu_custom_call.1} parent=15 // pred_check
          %p115 = pneg %p57
        $region22: #{tpu_custom_call.1} parent=15 // pred_check_branch
          %117 = sbr.rel (%p115) target = $region24
        $region23: #{tpu_custom_call.1} parent=15 // pred_region
          %p118 = scmp.lt.s32.totalorder %s11, 2
          %s119 = scalar_select %p118, %s11, 2
          %s120 = smul.addr %s119, 8
          %s121 = scalar_lea.vmem %s1, %s120
        $region24: #{tpu_custom_call.1} parent=15 // pred_fallthru
          _
      $region16: #{tpu_custom_call.1} parent=5 // pred_fallthru
        _
      %p122 = scmp.le.s32.totalorder 1, %s11
      %p123 = scmp.lt.s32.totalorder %s11, 4
      %p124 = pnand %p122, %p123
      %p125 = pneg %p124
      // Predicated region
      $region25: #{tpu_custom_call.1} parent=5 // pred_check
        _
      $region26: #{tpu_custom_call.1} parent=5 // pred_check_branch
        %127 = sbr.rel (%p124) target = $region28
      $region27: #{tpu_custom_call.1} parent=5 // pred_region
        %s128 = ssub.s32 %s11, 1
        %p129 = scmp.lt.s32.totalorder %s16, 2
        %s130 = scalar_select %p129, %s16, 2
        %s131 = smul.addr %s130, 8
        %s132 = scalar_lea.vmem %s0, %s131
        %p133 = pneg %p37
        %p134 = pneg %p34
        %p135 = scmp.lt.s32.totalorder %s16, 2
        %s136 = scalar_select %p135, %s16, 2
        %s137 = smul.addr %s136, 8
        %s138 = scalar_lea.vmem %s1, %s137
        %p139 = pneg %p63
        %p140 = pneg %p60
        %p141 = pneg %p89
        %p142 = pneg %p86
        %s143 = sand.u32 %s76, 1
        %s144 = scalar_lea.sflag [#allocation3], %s143
        %s145 = sand.u32 %s76, 1
        %s146 = smul.addr %s145, 8
        %s147 = scalar_lea.vmem [#allocation2], %s146
        %p148 = scmp.lt.s32.totalorder %s16, 2
        %s149 = scalar_select %p148, %s16, 2
        %s150 = smul.addr %s149, 8
        %s151 = scalar_lea.vmem %s0, %s150
        %p152 = scmp.lt.s32.totalorder %s16, 2
        %s153 = scalar_select %p152, %s16, 2
        %s154 = smul.addr %s153, 8
        %s155 = scalar_lea.vmem %s1, %s154
        %v156 = vld [vmem:[%s155] sm:$0xff]
        %v157 = vld [vmem:[%s151] sm:$0xff]
        %158 = vmax.xlane.f32.xlu0 %v156
        %v159 = vpop.xlane.xlu0 %158
        %160 = vadd.xlane.f32.xlu0 %v156
        %v161 = vpop.xlane.xlu0 %160
        %v162 = vlaneseq
        %v163 = vand.u32 %v162, 127
        %164 = vset.pattern.permute.xlu0 0
        %165 = vperm.xlu0 %164, %v157
        %v166 = vpop.permute.xlu0 %165
        %vm167 = vcmp.eq.s32.totalorder %v163, %v166
        %v168 = vsel %vm167, %v156, 0.0
        %169 = vadd.xlane.f32.xlu0 %v168
        %v170 = vpop.xlane.xlu0 %169
        %vm171 = vcmp.eq.s32.totalorder %v163, 28
        %v172 = vsel %vm171, %v156, 0.0
        %173 = vadd.xlane.f32.xlu0 %v172
        %v174 = vpop.xlane.xlu0 %173
        %v175 = vsub.f32 %v156, %v159
        %v176 = vmul.f32 %v175, 1.442695
        %v177 = vpow.pop %v176
        %178 = vadd.xlane.f32.xlu0 %v177
        %v179 = vpop.xlane.xlu0 %178
        %v180 = vlog2.pop %v179
        %v181 = vmul.f32 %v180, 0.6931472
        %v182 = vadd.f32 %v159, %v181
        %v183 = vmul.f32 %v182, 128.0
        %v184 = vsub.f32 %v161, %v183
        %v185 = vsub.f32 %v170, %v182
        %v186 = vsub.f32 %v174, %v182
        %vm187 = vcmp.eq.s32.totalorder %v157, 28
        %v188 = vsel %vm187, 127.0, 126.0
        %v189 = vsub.f32 %v184, %v185
        %v190 = vsel %vm187, 0.0, %v186
        %v191 = vsub.f32 %v189, %v190
        %v192 = vmul.f32 %v188, -7.138867
        %v193 = vsub.f32 %v192, %v191
        %v194 = vmul.f32 %v193, 0.0007936508
        %v195 = vsub.f32 -0.105360515, %v185
        %v196 = vmul.f32 %v195, 0.9
        %v197 = vadd.f32 %v194, %v196
        %s198 = smul.u32 %s16, 8
        %v199 = vlaneseq
        %v200 = vshrl.u32 %v199, 7
        %v201 = vstv %s198
        %v202 = vadd.s32 %v201, %v200
        %vm203 = vcmp.lt.s32.totalorder %v202, 18
        %v204 = vsel %vm203, %v197, 0.0
        %vm205 = vcmask 7168
        %v206 = vsel %vm205, %v204, 0.0
        %207 = vadd.xlane.f32.xlu0 %v206
        %v208 = vpop.xlane.xlu0 %207
        %v209 = vrot.slane %v208, 4
        %v210 = vadd.f32 %v208, %v209
        %v211 = vrot.slane %v210, 2
        %v212 = vadd.f32 %v210, %v211
        %v213 = vrot.slane %v212, 1
        %v214 = vadd.f32 %v212, %v213
        %s215 = vtos %v214
        %v216 = vstv %s215
        %217 = vst [vmem:[%s147] sm:$0xff] %v216
        %s218 = sand.u32 %s76, 1
        %s219 = scalar_lea.sflag [#allocation3], %s218
        %s220 = sand.u32 %s76, 1
        %s221 = smul.addr %s220, 8
        %s222 = scalar_lea.vmem [#allocation2], %s221
        // Predicated region
        $region29: #{tpu_custom_call.1} parent=27 // pred_check
          %p223 = pneg %p86
        $region30: #{tpu_custom_call.1} parent=27 // pred_check_branch
          %225 = sbr.rel (%p223) target = $region32
        $region31: #{tpu_custom_call.1} parent=27 // pred_region
          %s227 = ssub.s32 128, 128
          %228 = vsyncadd %s219, %s227
          %s229 = smul.addr %s16, 128
          %s230 = scalar_lea.hbm %s2, %s229
          %s232 = sshll.u32 %s222, 4
          %s233 = int_to_ptr.vmem [resolvable:$true] %s232
          %235 = dma.vmem_to_hbm [thread:$0]  %s233, 128, %s230, %s219
        $region32: #{tpu_custom_call.1} parent=27 // pred_fallthru
          _
      $region28: #{tpu_custom_call.1} parent=5 // pred_fallthru
        _
      %p236 = scmp.le.s32.totalorder 2, %s11
      // Predicated region
      $region33: #{tpu_custom_call.1} parent=5 // pred_check
        %p237 = pneg %p236
      $region34: #{tpu_custom_call.1} parent=5 // pred_check_branch
        %239 = sbr.rel (%p237) target = $region36
      $region35: #{tpu_custom_call.1} parent=5 // pred_region
        %s240 = ssub.s32 %s11, 2
        // Predicated region
        $region37: #{tpu_custom_call.1} parent=35 // pred_check
          %p241 = pneg %p92
        $region38: #{tpu_custom_call.1} parent=35 // pred_check_branch
          %243 = sbr.rel (%p241) target = $region40
        $region39: #{tpu_custom_call.1} parent=35 // pred_region
          %s244 = sand.u32 %s77, 1
          %s245 = scalar_lea.sflag [#allocation3], %s244
          %s246 = sand.u32 %s77, 1
          %s247 = smul.addr %s246, 8
          %s248 = scalar_lea.vmem [#allocation2], %s247
          %249 = dma.done %s245, 128
        $region40: #{tpu_custom_call.1} parent=35 // pred_fallthru
          _
      $region36: #{tpu_custom_call.1} parent=5 // pred_fallthru
        _
    $region6: #{tpu_custom_call.1} parent=1 // loop_footer
      %s15 = sadd.s32 1, %s11
    $region7: #{tpu_custom_call.1} parent=1 // loop_footer_branch
      %10 = sbr.rel target = $region3
    $region8: #{tpu_custom_call.1} parent=1 // loop_exit
      _
    %250 = vsyncpa [#allocation3], 1
    %s251 = scalar_lea.sflag [#allocation3], 1
    %252 = vsyncpa %s251, 1

</llo_original>
